<compile_context>
chip_gen: v5e
topology: v5e:2x2
jax: 0.10.0
libtpu: 0.0.40
codegen_flags: <defaults>
</compile_context>

<pallas_src>
import functools

import jax
import jax.numpy as jnp
from jax import lax
from jax.experimental import pallas as pl
from jax.experimental.pallas import tpu as pltpu


# ----------------------------------------------------------------------------
# Kernels
# ----------------------------------------------------------------------------

def _gin_layer_kernel(a_ref, h_ref, w1_ref, b1_ref, w2_ref, b2_ref,
                      z_ref, stats_ref, agg_ref, *, n_nodes, tile_m):
    """One GINConv layer: z = Lin2(ReLU(Lin1(A_hat @ h))) + per-tile BN partials.

    h is already bf16 (raw features or precomputed ReLU(BN(z_prev))), so the hot
    k-loop is a single MXU accumulate with zero per-step elementwise work.
    """
    i = pl.program_id(0)          # node row tile  ("parallel")
    k = pl.program_id(1)          # reduction tile ("arbitrary", innermost)
    nk = pl.num_programs(1)

    @pl.when(k == 0)
    def _():
        agg_ref[...] = jnp.zeros_like(agg_ref)

    # GIN aggregation: A_hat[i-tile, k-tile] @ h[k-tile]  (f32 accumulate).
    agg_ref[...] += jnp.dot(a_ref[...], h_ref[...],
                            preferred_element_type=jnp.float32)

    @pl.when(k == nk - 1)
    def _():
        agg = agg_ref[...].astype(jnp.bfloat16)
        z = jnp.dot(agg, w1_ref[...], preferred_element_type=jnp.float32) + b1_ref[...]
        z = jnp.maximum(z, 0.0).astype(jnp.bfloat16)
        z = jnp.dot(z, w2_ref[...], preferred_element_type=jnp.float32) + b2_ref[...]

        # Masked per-tile partial BN statistics from the f32 z (padded rows excluded).
        row = i * tile_m + lax.broadcasted_iota(jnp.int32, (tile_m, 1), 0)
        mask = (row < n_nodes).astype(jnp.float32)
        zm = z * mask
        ssum = jnp.sum(zm, axis=0, keepdims=True)        # (1, H)
        ssq = jnp.sum(zm * z, axis=0, keepdims=True)     # (1, H)
        # Direct row writes (no concatenate / relayout in the epilogue).
        stats_ref[0:1, 0:1, :] = ssum[None, :, :]
        stats_ref[0:1, 1:2, :] = ssq[None, :, :]

        z_ref[...] = z.astype(z_ref.dtype)               # bf16 writeback


def _bn_relu_kernel(z_ref, scale_ref, shift_ref, h_ref):
    """h = ReLU(z * scale + shift) -> bf16. scale/shift are resident (1, H) f32."""
    z = z_ref[...].astype(jnp.float32)
    h_ref[...] = jnp.maximum(z * scale_ref[...] + shift_ref[...], 0.0
                             ).astype(h_ref.dtype)


def _pool_head_kernel(pool_ref, z_ref, scale_ref, shift_ref, wl_ref, bl_ref,
                      out_ref, acc_ref, *, n_classes):
    """ReLU(BN(z2)) -> global_add_pool -> Linear -> log_softmax (lane-padded).

    BN scale/shift are precomputed and resident, so each z2 element is touched
    exactly once (normalize+ReLU fused into the pooling pass).
    """
    k = pl.program_id(0)
    nk = pl.num_programs(0)

    @pl.when(k == 0)
    def _():
        acc_ref[...] = jnp.zeros_like(acc_ref)

    h = jnp.maximum(z_ref[...].astype(jnp.float32) * scale_ref[...]
                    + shift_ref[...], 0.0).astype(jnp.bfloat16)

    # global_add_pool as one-hot matmul: P[(G, k-tile)] @ h[k-tile].
    acc_ref[...] += jnp.dot(pool_ref[...], h, preferred_element_type=jnp.float32)

    @pl.when(k == nk - 1)
    def _():
        pooled = acc_ref[...].astype(jnp.bfloat16)
        logits = jnp.dot(pooled, wl_ref[...],
                         preferred_element_type=jnp.float32) + bl_ref[...]
        # Mask padded class lanes out of the softmax.
        cls = lax.broadcasted_iota(jnp.int32, logits.shape, 1)
        logits = jnp.where(cls < n_classes, logits, -1e30)
        m = jnp.max(logits, axis=1, keepdims=True)
        zc = logits - m
        lse = jnp.log(jnp.sum(jnp.exp(zc), axis=1, keepdims=True))
        out_ref[...] = zc - lse


# ----------------------------------------------------------------------------
# Wrappers
# ----------------------------------------------------------------------------

def _round_up(x, m):
    return ((x + m - 1) // m) * m


def _pad2(a, rows, cols, dtype):
    out = jnp.zeros((rows, cols), dtype)
    return out.at[:a.shape[0], :a.shape[1]].set(a.astype(dtype))


def _bn_scale_shift(stats, gamma, beta, *, n_nodes, eps):
    """Tiny O(H) BN finalization hoisted out of the grid loops (review item #1)."""
    s = jnp.sum(stats, axis=0)                           # (2, H)
    mean = s[0:1, :] * (1.0 / n_nodes)
    var = s[1:2, :] * (1.0 / n_nodes) - mean * mean      # biased (training mode)
    # NOTE: E[x^2]-E[x]^2 in f32; fine at current tolerance (see review concerns).
    scale = gamma * lax.rsqrt(var + eps)
    shift = beta - mean * scale
    return scale, shift


def _layer_call(a_p, h_in, w1, b1, w2, b2, *, n_nodes, tile_m, tile_k):
    n_pad = a_p.shape[0]
    cin = h_in.shape[1]
    h_dim = w1.shape[1]
    ni = n_pad // tile_m
    nk = n_pad // tile_k

    kernel = functools.partial(_gin_layer_kernel, n_nodes=n_nodes, tile_m=tile_m)

    return pl.pallas_call(
        kernel,
        out_shape=(jax.ShapeDtypeStruct((n_pad, h_dim), jnp.bfloat16),
                   jax.ShapeDtypeStruct((ni, 2, h_dim), jnp.float32)),
        grid_spec=pltpu.PrefetchScalarGridSpec(
            num_scalar_prefetch=0,
            grid=(ni, nk),
            in_specs=[
                # Streamed bf16 tiles: A_hat (i, k) and input node features (k).
                pl.BlockSpec((tile_m, tile_k), lambda i, k: (i, k)),
                pl.BlockSpec((tile_k, cin), lambda i, k: (k, 0)),
                # Resident weights / biases (constant index maps).
                pl.BlockSpec((cin, h_dim), lambda i, k: (0, 0)),
                pl.BlockSpec((1, h_dim), lambda i, k: (0, 0)),
                pl.BlockSpec((h_dim, h_dim), lambda i, k: (0, 0)),
                pl.BlockSpec((1, h_dim), lambda i, k: (0, 0)),
            ],
            out_specs=(pl.BlockSpec((tile_m, h_dim), lambda i, k: (i, 0)),
                       pl.BlockSpec((1, 2, h_dim), lambda i, k: (i, 0, 0))),
            scratch_shapes=[pltpu.VMEM((tile_m, cin), jnp.float32)]),
        compiler_params=pltpu.CompilerParams(
            dimension_semantics=("parallel", "arbitrary")),
    )(a_p, h_in, w1, b1, w2, b2)


def _bn_relu_call(z, scale, shift, *, tile_m):
    n_pad, h_dim = z.shape
    ni = n_pad // tile_m
    return pl.pallas_call(
        _bn_relu_kernel,
        out_shape=jax.ShapeDtypeStruct((n_pad, h_dim), jnp.bfloat16),
        grid_spec=pltpu.PrefetchScalarGridSpec(
            num_scalar_prefetch=0,
            grid=(ni,),
            in_specs=[pl.BlockSpec((tile_m, h_dim), lambda i: (i, 0)),
                      pl.BlockSpec((1, h_dim), lambda i: (0, 0)),
                      pl.BlockSpec((1, h_dim), lambda i: (0, 0))],
            out_specs=pl.BlockSpec((tile_m, h_dim), lambda i: (i, 0))),
        compiler_params=pltpu.CompilerParams(
            dimension_semantics=("parallel",)),
    )(z, scale, shift)


def _head_call(pool_p, z2, scale2, shift2, wl, bl, *, n_classes, tile_k):
    g_pad, n_pad = pool_p.shape
    h_dim = z2.shape[1]
    c_pad = wl.shape[1]
    nk = n_pad // tile_k

    kernel = functools.partial(_pool_head_kernel, n_classes=n_classes)

    return pl.pallas_call(
        kernel,
        out_shape=jax.ShapeDtypeStruct((g_pad, c_pad), jnp.float32),
        grid_spec=pltpu.PrefetchScalarGridSpec(
            num_scalar_prefetch=0,
            grid=(nk,),
            in_specs=[pl.BlockSpec((g_pad, tile_k), lambda k: (0, k)),
                      pl.BlockSpec((tile_k, h_dim), lambda k: (k, 0)),
                      pl.BlockSpec((1, h_dim), lambda k: (0, 0)),
                      pl.BlockSpec((1, h_dim), lambda k: (0, 0)),
                      pl.BlockSpec((h_dim, c_pad), lambda k: (0, 0)),
                      pl.BlockSpec((1, c_pad), lambda k: (0, 0))],
            out_specs=pl.BlockSpec((g_pad, c_pad), lambda k: (0, 0)),
            scratch_shapes=[pltpu.VMEM((g_pad, h_dim), jnp.float32)]),
        compiler_params=pltpu.CompilerParams(
            dimension_semantics=("arbitrary",)),
    )(pool_p, z2, scale2, shift2, wl, bl)


def gin_forward(a_hat, x, pool, params, *, tile_m_cap=512, tile_k_cap=512,
                bn_eps=1e-5):
    """a_hat: (N, N) = A + (1+eps) I;  x: (N, Cin);  pool: (G, N) one-hot.

    tile caps must be power-of-two multiples of 128 (so padded N divides evenly).
    """
    n, in_c = x.shape
    g = pool.shape[0]
    hid = params["w12"].shape[1]
    out_c = params["wl"].shape[1]

    # ---- tiling: decoupled row / reduction tiles, sized up to the caps ----
    n128 = _round_up(n, 128)
    tile_k = min(tile_k_cap, n128)
    tile_m = min(tile_m_cap, n128)
    n_pad = _round_up(n, max(tile_m, tile_k))
    # Keep >= 2 row tiles when the graph allows it, so the "parallel" axis can
    # feed both v7x TensorCores (no effect on v5e/v6e correctness or perf).
    if n_pad // tile_m < 2 and tile_m > 128:
        tile_m //= 2

    cin_pad = _round_up(in_c, 128)
    h_pad = _round_up(hid, 128)
    c_pad = _round_up(out_c, 128)
    g_pad = _round_up(g, 8)

    # bf16 for everything that feeds the MXU; f32 for biases / BN params.
    # NOTE: A_hat in bf16 is exact for small integer edge multiplicities only.
    a_p = _pad2(a_hat, n_pad, n_pad, jnp.bfloat16)
    x_p = _pad2(x, n_pad, cin_pad, jnp.bfloat16)
    pool_p = _pad2(pool, g_pad, n_pad, jnp.bfloat16)

    w11 = _pad2(params["w11"], cin_pad, h_pad, jnp.bfloat16)
    b11 = _pad2(params["b11"], 1, h_pad, jnp.float32)
    w12 = _pad2(params["w12"], h_pad, h_pad, jnp.bfloat16)
    b12 = _pad2(params["b12"], 1, h_pad, jnp.float32)
    g1 = _pad2(params["g1"], 1, h_pad, jnp.float32)
    be1 = _pad2(params["be1"], 1, h_pad, jnp.float32)
    w21 = _pad2(params["w21"], h_pad, h_pad, jnp.bfloat16)
    b21 = _pad2(params["b21"], 1, h_pad, jnp.float32)
    w22 = _pad2(params["w22"], h_pad, h_pad, jnp.bfloat16)
    b22 = _pad2(params["b22"], 1, h_pad, jnp.float32)
    g2 = _pad2(params["g2"], 1, h_pad, jnp.float32)
    be2 = _pad2(params["be2"], 1, h_pad, jnp.float32)
    wl = _pad2(params["wl"], h_pad, c_pad, jnp.bfloat16)
    bl = _pad2(params["bl"], 1, c_pad, jnp.float32)

    # Layer 1: raw bf16 x in, bf16 z1 + f32 stats out.
    z1, stats1 = _layer_call(a_p, x_p, w11, b11, w12, b12,
                             n_nodes=n, tile_m=tile_m, tile_k=tile_k)
    scale1, shift1 = _bn_scale_shift(stats1, g1, be1, n_nodes=n, eps=bn_eps)
    # h1 = ReLU(BN(z1)) precomputed once as bf16 (no per-row-tile re-normalize).
    h1 = _bn_relu_call(z1, scale1, shift1, tile_m=tile_m)

    # Layer 2: streams bf16 h1, identical hot loop to layer 1.
    z2, stats2 = _layer_call(a_p, h1, w21, b21, w22, b22,
                             n_nodes=n, tile_m=tile_m, tile_k=tile_k)
    scale2, shift2 = _bn_scale_shift(stats2, g2, be2, n_nodes=n, eps=bn_eps)

    # Head: fuses ReLU(BN(z2)) + global_add_pool + Linear + log_softmax;
    # z2 is read exactly once, output is lane-dense (c_pad = 128).
    out_pad = _head_call(pool_p, z2, scale2, shift2, wl, bl,
                         n_classes=out_c, tile_k=tile_k)
    return out_pad[:g, :out_c]


# ----------------------------------------------------------------------------
# Reference + setup
# ----------------------------------------------------------------------------

def gin_reference(a_hat, x, pool, params, bn_eps=1e-5):
    def layer(h, w1, b1, w2, b2, gam, bet):
        agg = a_hat @ h
        z = jnp.maximum(agg @ w1 + b1, 0.0)
        z = z @ w2 + b2
        mean = jnp.mean(z, axis=0, keepdims=True)
        var = jnp.mean((z - mean) ** 2, axis=0, keepdims=True)
        z = (z - mean) * lax.rsqrt(var + bn_eps) * gam + bet
        return jnp.maximum(z, 0.0)

    h1 = layer(x, params["w11"], params["b11"], params["w12"], params["b12"],
               params["g1"], params["be1"])
    h2 = layer(h1, params["w21"], params["b21"], params["w22"], params["b22"],
               params["g2"], params["be2"])
    pooled = pool @ h2
    logits = pooled @ params["wl"] + params["bl"]
    return jax.nn.log_softmax(logits, axis=1)


def _init_params(key, in_channels, hidden_channels, out_channels):
    ks = jax.random.split(key, 5)

    def lin(k, fan_in, fan_out):
        w = jax.random.normal(k, (fan_in, fan_out), jnp.float32) * (1.0 / jnp.sqrt(fan_in))
        b = jnp.zeros((1, fan_out), jnp.float32)
        return w, b

    w11, b11 = lin(ks[0], in_channels, hidden_channels)
    w12, b12 = lin(ks[1], hidden_channels, hidden_channels)
    w21, b21 = lin(ks[2], hidden_channels, hidden_channels)
    w22, b22 = lin(ks[3], hidden_channels, hidden_channels)
    wl, bl = lin(ks[4], hidden_channels, out_channels)
    return dict(
        w11=w11, b11=b11, w12=w12, b12=b12,
        g1=jnp.ones((1, hidden_channels), jnp.float32),
        be1=jnp.zeros((1, hidden_channels), jnp.float32),
        w21=w21, b21=b21, w22=w22, b22=b22,
        g2=jnp.ones((1, hidden_channels), jnp.float32),
        be2=jnp.zeros((1, hidden_channels), jnp.float32),
        wl=wl, bl=bl,
    )


if __name__ == "__main__":
    key = jax.random.PRNGKey(0)

    in_channels, hidden_channels, out_channels = 8, 32, 4
    num_nodes, num_graphs = 16, 2
    gin_eps = 0.0  # GINConv default

    k_x, k_p = jax.random.split(key, 2)

    # Node features.
    x = jax.random.normal(k_x, (num_nodes, in_channels), jnp.float32)

    # Simple deterministic edge_index (ring within each graph, both directions).
    src, dst = [], []
    per_graph = num_nodes // num_graphs
    for gidx in range(num_graphs):
        base = gidx * per_graph
        for i in range(per_graph):
            a, b = base + i, base + (i + 1) % per_graph
            src += [a, b]
            dst += [b, a]
    edge_index = jnp.array([src, dst], dtype=jnp.int32)   # (2, E)

    # Dense aggregation matrix: A[i, j] = #edges j -> i ; A_hat = A + (1+eps) I.
    A = jnp.zeros((num_nodes, num_nodes), jnp.float32).at[
        edge_index[1], edge_index[0]].add(1.0)
    a_hat = A + (1.0 + gin_eps) * jnp.eye(num_nodes, dtype=jnp.float32)

    # batch vector -> one-hot pooling matrix (G, N) for global_add_pool.
    batch = jnp.repeat(jnp.arange(num_graphs, dtype=jnp.int32), per_graph)
    pool = (batch[None, :] == jnp.arange(num_graphs, dtype=jnp.int32)[:, None]
            ).astype(jnp.float32)

    params = _init_params(k_p, in_channels, hidden_channels, out_channels)

    out = gin_forward(a_hat, x, pool, params)
    out = jax.block_until_ready(out)

    assert out.shape == (num_graphs, out_channels)
    assert bool(jnp.all(jnp.isfinite(out)))

    # Loose check vs f32 reference (kernel uses bf16 MXU inputs + bf16 z stream).
    ref = gin_reference(a_hat, x, pool, params)
    max_err = float(jnp.max(jnp.abs(out - ref)))
    assert max_err < 0.3, f"max abs error vs reference too large: {max_err}"

    print("KERNEL_OK")
</pallas_src>

<mosaic_0001>
module attributes {stable_mosaic.version = 11 : i64} {
  func.func @_gin_layer_kernel(%arg0: i32, %arg1: i32, %arg2: memref<128x128xbf16, #tpu.memory_space<vmem>>, %arg3: memref<128x128xbf16, #tpu.memory_space<vmem>>, %arg4: memref<128x128xbf16, #tpu.memory_space<vmem>>, %arg5: memref<1x128xf32, #tpu.memory_space<vmem>>, %arg6: memref<128x128xbf16, #tpu.memory_space<vmem>>, %arg7: memref<1x128xf32, #tpu.memory_space<vmem>>, %arg8: memref<128x128xbf16, #tpu.memory_space<vmem>>, %arg9: memref<1x2x128xf32, #tpu.memory_space<vmem>>, %arg10: memref<128x128xf32, #tpu.memory_space<vmem>>) attributes {dimension_semantics = [#tpu.dimension_semantics<parallel>, #tpu.dimension_semantics<arbitrary>], iteration_bounds = array<i64: 1, 1>, scalar_prefetch = 0 : i64, scratch_operands = 1 : i64, tpu.core_type = #tpu.core_type<tc>, window_params = [{transform_indices = @transform_0, window_bounds = array<i64: 128, 128>}, {transform_indices = @transform_1, window_bounds = array<i64: 128, 128>}, {pipeline_mode = #tpu.pipeline_mode<synchronous>, transform_indices = @transform_2, window_bounds = array<i64: 128, 128>}, {pipeline_mode = #tpu.pipeline_mode<synchronous>, transform_indices = @transform_3, window_bounds = array<i64: 1, 128>}, {pipeline_mode = #tpu.pipeline_mode<synchronous>, transform_indices = @transform_4, window_bounds = array<i64: 128, 128>}, {pipeline_mode = #tpu.pipeline_mode<synchronous>, transform_indices = @transform_5, window_bounds = array<i64: 1, 128>}, {transform_indices = @transform_6, window_bounds = array<i64: 128, 128>}, {transform_indices = @transform_7, window_bounds = array<i64: 1, 2, 128>}]} {
    %c0_i32 = arith.constant 0 : i32
    %0 = arith.cmpi eq, %arg1, %c0_i32 : i32
    %1 = arith.extui %0 : i1 to i32
    %c0_i32_0 = arith.constant 0 : i32
    %2 = arith.cmpi ne, %1, %c0_i32_0 : i32
    scf.if %2 {
      %cst_10 = arith.constant 0.000000e+00 : f32
      %12 = vector.broadcast %cst_10 : f32 to vector<128x128xf32>
      %c0_11 = arith.constant 0 : index
      %c0_12 = arith.constant 0 : index
      %13 = vector.load %arg10[%c0_11, %c0_12] : memref<128x128xf32, #tpu.memory_space<vmem>>, vector<128x128xf32>
      tpu.vector_store %arg10[%c0_11, %c0_12], %12 {strides = array<i32>} : memref<128x128xf32, #tpu.memory_space<vmem>>, vector<128x128xf32>,
    } else {
    }
    %c0 = arith.constant 0 : index
    %c0_1 = arith.constant 0 : index
    %3 = vector.load %arg10[%c0, %c0_1] : memref<128x128xf32, #tpu.memory_space<vmem>>, vector<128x128xf32>
    %c0_2 = arith.constant 0 : index
    %c0_3 = arith.constant 0 : index
    %4 = vector.load %arg2[%c0_2, %c0_3] : memref<128x128xbf16, #tpu.memory_space<vmem>>, vector<128x128xbf16>
    %c0_4 = arith.constant 0 : index
    %c0_5 = arith.constant 0 : index
    %5 = vector.load %arg3[%c0_4, %c0_5] : memref<128x128xbf16, #tpu.memory_space<vmem>>, vector<128x128xbf16>
    %cst = arith.constant dense<0.000000e+00> : vector<128x128xf32>
    %6 = tpu.matmul %4, %5, %cst {dimension_numbers = #tpu.dot_dimension_numbers<[1], [0], [0], [1], [0, 0, 1, 1], [], []>} : vector<128x128xbf16>, vector<128x128xbf16>, vector<128x128xf32> -> vector<128x128xf32>
    %7 = arith.addf %3, %6 : vector<128x128xf32>
    %c0_6 = arith.constant 0 : index
    %c0_7 = arith.constant 0 : index
    %8 = vector.load %arg10[%c0_6, %c0_7] : memref<128x128xf32, #tpu.memory_space<vmem>>, vector<128x128xf32>
    tpu.vector_store %arg10[%c0_6, %c0_7], %7 {strides = array<i32>} : memref<128x128xf32, #tpu.memory_space<vmem>>, vector<128x128xf32>,
    %c0_i32_8 = arith.constant 0 : i32
    %9 = arith.cmpi eq, %arg1, %c0_i32_8 : i32
    %10 = arith.extui %9 : i1 to i32
    %c0_i32_9 = arith.constant 0 : i32
    %11 = arith.cmpi ne, %10, %c0_i32_9 : i32
    scf.if %11 {
      %c0_10 = arith.constant 0 : index
      %c0_11 = arith.constant 0 : index
      %12 = vector.load %arg10[%c0_10, %c0_11] : memref<128x128xf32, #tpu.memory_space<vmem>>, vector<128x128xf32>
      %13 = arith.truncf %12 : vector<128x128xf32> to vector<128x128xbf16>
      %c0_12 = arith.constant 0 : index
      %c0_13 = arith.constant 0 : index
      %14 = vector.load %arg4[%c0_12, %c0_13] : memref<128x128xbf16, #tpu.memory_space<vmem>>, vector<128x128xbf16>
      %cst_14 = arith.constant dense<0.000000e+00> : vector<128x128xf32>
      %15 = tpu.matmul %13, %14, %cst_14 {dimension_numbers = #tpu.dot_dimension_numbers<[1], [0], [0], [1], [0, 0, 1, 1], [], []>} : vector<128x128xbf16>, vector<128x128xbf16>, vector<128x128xf32> -> vector<128x128xf32>
      %c0_15 = arith.constant 0 : index
      %c0_16 = arith.constant 0 : index
      %16 = vector.load %arg5[%c0_15, %c0_16] : memref<1x128xf32, #tpu.memory_space<vmem>>, vector<1x128xf32>
      %17 = vector.broadcast %16 : vector<1x128xf32> to vector<128x128xf32>
      %18 = arith.addf %15, %17 : vector<128x128xf32>
      %cst_17 = arith.constant 0.000000e+00 : f32
      %19 = vector.broadcast %cst_17 : f32 to vector<128x128xf32>
      %20 = arith.maximumf %18, %19 : vector<128x128xf32>
      %21 = arith.truncf %20 : vector<128x128xf32> to vector<128x128xbf16>
      %c0_18 = arith.constant 0 : index
      %c0_19 = arith.constant 0 : index
      %22 = vector.load %arg6[%c0_18, %c0_19] : memref<128x128xbf16, #tpu.memory_space<vmem>>, vector<128x128xbf16>
      %cst_20 = arith.constant dense<0.000000e+00> : vector<128x128xf32>
      %23 = tpu.matmul %21, %22, %cst_20 {dimension_numbers = #tpu.dot_dimension_numbers<[1], [0], [0], [1], [0, 0, 1, 1], [], []>} : vector<128x128xbf16>, vector<128x128xbf16>, vector<128x128xf32> -> vector<128x128xf32>
      %c0_21 = arith.constant 0 : index
      %c0_22 = arith.constant 0 : index
      %24 = vector.load %arg7[%c0_21, %c0_22] : memref<1x128xf32, #tpu.memory_space<vmem>>, vector<1x128xf32>
      %25 = vector.broadcast %24 : vector<1x128xf32> to vector<128x128xf32>
      %26 = arith.addf %23, %25 : vector<128x128xf32>
      %c128_i32 = arith.constant 128 : i32
      %27 = arith.muli %arg0, %c128_i32 : i32
      %28 = tpu.iota {dimensions = array<i32: 0>} : vector<128x1xi32>
      %29 = vector.broadcast %27 : i32 to vector<128x1xi32>
      %30 = arith.addi %29, %28 : vector<128x1xi32>
      %c16_i32 = arith.constant 16 : i32
      %31 = vector.broadcast %c16_i32 : i32 to vector<128x1xi32>
      %32 = arith.cmpi slt, %30, %31 : vector<128x1xi32>
      %33 = arith.extui %32 : vector<128x1xi1> to vector<128x1xi32>
      %34 = arith.sitofp %33 : vector<128x1xi32> to vector<128x1xf32>
      %35 = vector.broadcast %34 : vector<128x1xf32> to vector<128x128xf32>
      %36 = arith.mulf %26, %35 : vector<128x128xf32>
      %cst_23 = arith.constant dense<0.000000e+00> : vector<128xf32>
      %37 = vector.multi_reduction <add>, %36, %cst_23 [0] : vector<128x128xf32> to vector<128xf32>
      %38 = vector.shape_cast %37 : vector<128xf32> to vector<1x128xf32>
      %39 = arith.mulf %36, %26 : vector<128x128xf32>
      %cst_24 = arith.constant dense<0.000000e+00> : vector<128xf32>
      %40 = vector.multi_reduction <add>, %39, %cst_24 [0] : vector<128x128xf32> to vector<128xf32>
      %41 = vector.shape_cast %40 : vector<128xf32> to vector<1x128xf32>
      %42 = vector.shape_cast %38 : vector<1x128xf32> to vector<1x1x128xf32>
      %c0_25 = arith.constant 0 : index
      %c0_26 = arith.constant 0 : index
      %c0_27 = arith.constant 0 : index
      %43 = vector.load %arg9[%c0_25, %c0_26, %c0_27] : memref<1x2x128xf32, #tpu.memory_space<vmem>>, vector<1x1x128xf32>
      tpu.vector_store %arg9[%c0_25, %c0_26, %c0_27], %42 {strides = array<i32>} : memref<1x2x128xf32, #tpu.memory_space<vmem>>, vector<1x1x128xf32>,
      %44 = vector.shape_cast %41 : vector<1x128xf32> to vector<1x1x128xf32>
      %c0_28 = arith.constant 0 : index
      %c1 = arith.constant 1 : index
      %c0_29 = arith.constant 0 : index
      %45 = vector.load %arg9[%c0_28, %c1, %c0_29] : memref<1x2x128xf32, #tpu.memory_space<vmem>>, vector<1x1x128xf32>
      tpu.vector_store %arg9[%c0_28, %c1, %c0_29], %44 {strides = array<i32>} : memref<1x2x128xf32, #tpu.memory_space<vmem>>, vector<1x1x128xf32>,
      %46 = arith.truncf %26 : vector<128x128xf32> to vector<128x128xbf16>
      %c0_30 = arith.constant 0 : index
      %c0_31 = arith.constant 0 : index
      %47 = vector.load %arg8[%c0_30, %c0_31] : memref<128x128xbf16, #tpu.memory_space<vmem>>, vector<128x128xbf16>
      tpu.vector_store %arg8[%c0_30, %c0_31], %46 {strides = array<i32>} : memref<128x128xbf16, #tpu.memory_space<vmem>>, vector<128x128xbf16>,
    } else {
    }
    return
  }
  func.func @transform_0(%arg0: i32, %arg1: i32) -> (i32, i32) {
    %c0_i32 = arith.constant 0 : i32
    return %arg0, %arg1 : i32, i32
  }
  func.func @transform_1(%arg0: i32, %arg1: i32) -> (i32, i32) {
    %c0_i32 = arith.constant 0 : i32
    %c0_i32_0 = arith.constant 0 : i32
    return %arg1, %c0_i32 : i32, i32
  }
  func.func @transform_2(%arg0: i32, %arg1: i32) -> (i32, i32) {
    %c0_i32 = arith.constant 0 : i32
    %c0_i32_0 = arith.constant 0 : i32
    %c0_i32_1 = arith.constant 0 : i32
    return %c0_i32, %c0_i32_0 : i32, i32
  }
  func.func @transform_3(%arg0: i32, %arg1: i32) -> (i32, i32) {
    %c0_i32 = arith.constant 0 : i32
    %c0_i32_0 = arith.constant 0 : i32
    %c0_i32_1 = arith.constant 0 : i32
    return %c0_i32, %c0_i32_0 : i32, i32
  }
  func.func @transform_4(%arg0: i32, %arg1: i32) -> (i32, i32) {
    %c0_i32 = arith.constant 0 : i32
    %c0_i32_0 = arith.constant 0 : i32
    %c0_i32_1 = arith.constant 0 : i32
    return %c0_i32, %c0_i32_0 : i32, i32
  }
  func.func @transform_5(%arg0: i32, %arg1: i32) -> (i32, i32) {
    %c0_i32 = arith.constant 0 : i32
    %c0_i32_0 = arith.constant 0 : i32
    %c0_i32_1 = arith.constant 0 : i32
    return %c0_i32, %c0_i32_0 : i32, i32
  }
  func.func @transform_6(%arg0: i32, %arg1: i32) -> (i32, i32) {
    %c0_i32 = arith.constant 0 : i32
    %c0_i32_0 = arith.constant 0 : i32
    return %arg0, %c0_i32 : i32, i32
  }
  func.func @transform_7(%arg0: i32, %arg1: i32) -> (i32, i32, i32) {
    %c0_i32 = arith.constant 0 : i32
    %c0_i32_0 = arith.constant 0 : i32
    %c0_i32_1 = arith.constant 0 : i32
    return %arg0, %c0_i32, %c0_i32_0 : i32, i32, i32
  }
}

</mosaic_0001>

<llo_original>
// kernel: tpu_custom_call.1
$region0: #{tpu_custom_call.1}
  #allocation0 [shape = 'u32[]', space=smem, size = 0x4, offset = 0x4, fixed_abs, tag = 'smem constant byte address 0x4 - core index']
  #allocation1 [shape = 'u32[72,128]{1,0:T(1,128)}', space=vmem, size = 0x9000, scoped, tag = 'internal scratch']
  #allocation2 [shape = 'f32[128,128]{1,0:T(8,128)}', space=vmem, size = 0x10000, scoped, tag = 'scratch operand']
  %s0 = inlined_call_operand.hbm [shape: bf16[128,128], index: 0, kind: input, shape index: {}]
  %s1 = inlined_call_operand.hbm [shape: bf16[128,128], index: 1, kind: input, shape index: {}]
  %s2 = inlined_call_operand.hbm [shape: bf16[128,128], index: 2, kind: input, shape index: {}]
  %s3 = inlined_call_operand.vmem [shape: f32[1,128], index: 3, kind: input, shape index: {}]
  %s4 = inlined_call_operand.hbm [shape: bf16[128,128], index: 4, kind: input, shape index: {}]
  %s5 = inlined_call_operand.vmem [shape: f32[1,128], index: 5, kind: input, shape index: {}]
  %s6 = inlined_call_operand.hbm [shape: bf16[128,128], index: 6, kind: output, shape index: {0}]
  %s7 = inlined_call_operand.hbm [shape: f32[1,2,128], index: 7, kind: output, shape index: {1}]
  %8 = xla_tuple %s6, %s7
  %s9 = sld [smem:[#allocation0]]
  $region66: #{tpu_custom_call.1} parent=0
    _
  %s11 = ssub.s32 1, %s9
  %s12 = scalar_select 0, %s11, %s9
  $region1: #{tpu_custom_call.1} parent=0
    #allocation3 [shape = 'u8[32768]{0}', space=vmem, size = 0x8000, scoped, tag = 'input window, operand 0, single buffered']
    #allocation4 [shape = 's32[1]{0}', space=sflag, size = 0x4, scoped, tag = 'scoped memory for tpu_custom_call.1']
    #allocation5 [shape = 's32[1]{0}', space=sflag, size = 0x4, scoped, tag = 'scoped memory for tpu_custom_call.1']
    #allocation6 [shape = 'u8[32768]{0}', space=vmem, size = 0x8000, scoped, tag = 'input window, operand 1, single buffered']
    #allocation7 [shape = 's32[1]{0}', space=sflag, size = 0x4, scoped, tag = 'scoped memory for tpu_custom_call.1']
    #allocation8 [shape = 'u8[32768]{0}', space=vmem, size = 0x8000, scoped, tag = 'input window, operand 2, single buffered']
    #allocation9 [shape = 'u8[32768]{0}', space=vmem, size = 0x8000, scoped, tag = 'input window, operand 4, single buffered']
    #allocation10 [shape = 's32[1]{0}', space=sflag, size = 0x4, scoped, tag = 'scoped memory for tpu_custom_call.1']
    #allocation11 [shape = 'u8[32768]{0}', space=vmem, size = 0x8000, scoped, tag = 'output window, operand 0, single buffered']
    #allocation12 [shape = 'u8[1024]{0}', space=vmem, size = 0x400, scoped, tag = 'output window, operand 1, single buffered']
    #allocation13 [shape = 's32[1]{0}', space=sflag, size = 0x4, scoped, tag = 'scoped memory for tpu_custom_call.1']
    %13 = vsyncpa [#allocation4], 0
    %14 = vsyncpa [#allocation7], 0
    %15 = vsyncpa [#allocation10], 0
    %16 = vsyncpa [#allocation5], 0
    %17 = vsyncpa [#allocation13], 0
    // Predicated region
    $region2: #{tpu_custom_call.1} parent=1 // pred_check
      _
    $region3: #{tpu_custom_call.1} parent=1 // pred_check_branch
      %19 = sbr.rel (0) target = $region5
    $region4: #{tpu_custom_call.1} parent=1 // pred_region
      %21 = vsyncadd [#allocation4], 0
      %s22 = sshll.u32 %s0, 4
      %s23 = int_to_ptr.hbm [resolvable:$true] %s22
      %s24 = sshll.u32 [#allocation3], 4
      %s25 = int_to_ptr.vmem [resolvable:$true] %s24
      %30 = dma.hbm_to_vmem [thread:$0]  %s23, 1024, %s25, [#allocation4], 64, 64, 4
    $region5: #{tpu_custom_call.1} parent=1 // pred_fallthru
      _
    // Predicated region
    $region6: #{tpu_custom_call.1} parent=1 // pred_check
      _
    $region7: #{tpu_custom_call.1} parent=1 // pred_check_branch
      %32 = sbr.rel (0) target = $region9
    $region8: #{tpu_custom_call.1} parent=1 // pred_region
      %34 = vsyncadd [#allocation7], 0
      %s35 = sshll.u32 %s1, 4
      %s36 = int_to_ptr.hbm [resolvable:$true] %s35
      %s37 = sshll.u32 [#allocation6], 4
      %s38 = int_to_ptr.vmem [resolvable:$true] %s37
      %43 = dma.hbm_to_vmem [thread:$0]  %s36, 1024, %s38, [#allocation7], 64, 64, 4
    $region9: #{tpu_custom_call.1} parent=1 // pred_fallthru
      _
    // Predicated region
    $region10: #{tpu_custom_call.1} parent=1 // pred_check
      _
    $region11: #{tpu_custom_call.1} parent=1 // pred_check_branch
      %45 = sbr.rel (0) target = $region13
    $region12: #{tpu_custom_call.1} parent=1 // pred_region
      %47 = vsyncadd [#allocation7], 0
      %s48 = sshll.u32 %s2, 4
      %s49 = int_to_ptr.hbm [resolvable:$true] %s48
      %s50 = sshll.u32 [#allocation8], 4
      %s51 = int_to_ptr.vmem [resolvable:$true] %s50
      %56 = dma.hbm_to_vmem [thread:$0]  %s49, 1024, %s51, [#allocation7], 64, 64, 4
    $region13: #{tpu_custom_call.1} parent=1 // pred_fallthru
      _
    // Predicated region
    $region14: #{tpu_custom_call.1} parent=1 // pred_check
      _
    $region15: #{tpu_custom_call.1} parent=1 // pred_check_branch
      %58 = sbr.rel (0) target = $region17
    $region16: #{tpu_custom_call.1} parent=1 // pred_region
      _
    $region17: #{tpu_custom_call.1} parent=1 // pred_fallthru
      _
    // Predicated region
    $region18: #{tpu_custom_call.1} parent=1 // pred_check
      _
    $region19: #{tpu_custom_call.1} parent=1 // pred_check_branch
      %60 = sbr.rel (0) target = $region21
    $region20: #{tpu_custom_call.1} parent=1 // pred_region
      %62 = vsyncadd [#allocation10], 0
      %s63 = sshll.u32 %s4, 4
      %s64 = int_to_ptr.hbm [resolvable:$true] %s63
      %s65 = sshll.u32 [#allocation9], 4
      %s66 = int_to_ptr.vmem [resolvable:$true] %s65
      %71 = dma.hbm_to_vmem [thread:$0]  %s64, 1024, %s66, [#allocation10], 64, 64, 4
    $region21: #{tpu_custom_call.1} parent=1 // pred_fallthru
      _
    // Predicated region
    $region22: #{tpu_custom_call.1} parent=1 // pred_check
      _
    $region23: #{tpu_custom_call.1} parent=1 // pred_check_branch
      %73 = sbr.rel (0) target = $region25
    $region24: #{tpu_custom_call.1} parent=1 // pred_region
      _
    $region25: #{tpu_custom_call.1} parent=1 // pred_fallthru
      _
    // Predicated region
    $region26: #{tpu_custom_call.1} parent=1 // pred_check
      _
    $region27: #{tpu_custom_call.1} parent=1 // pred_check_branch
      %75 = sbr.rel (0) target = $region29
    $region28: #{tpu_custom_call.1} parent=1 // pred_region
      %77 = dma.done [#allocation4], 1024
    $region29: #{tpu_custom_call.1} parent=1 // pred_fallthru
      _
    // Predicated region
    $region30: #{tpu_custom_call.1} parent=1 // pred_check
      _
    $region31: #{tpu_custom_call.1} parent=1 // pred_check_branch
      %79 = sbr.rel (0) target = $region33
    $region32: #{tpu_custom_call.1} parent=1 // pred_region
      %81 = dma.done [#allocation7], 1024
    $region33: #{tpu_custom_call.1} parent=1 // pred_fallthru
      _
    // Predicated region
    $region34: #{tpu_custom_call.1} parent=1 // pred_check
      _
    $region35: #{tpu_custom_call.1} parent=1 // pred_check_branch
      %83 = sbr.rel (0) target = $region37
    $region36: #{tpu_custom_call.1} parent=1 // pred_region
      %85 = dma.done [#allocation7], 1024
    $region37: #{tpu_custom_call.1} parent=1 // pred_fallthru
      _
    // Predicated region
    $region38: #{tpu_custom_call.1} parent=1 // pred_check
      _
    $region39: #{tpu_custom_call.1} parent=1 // pred_check_branch
      %87 = sbr.rel (0) target = $region41
    $region40: #{tpu_custom_call.1} parent=1 // pred_region
      %89 = dma.done [#allocation10], 1024
    $region41: #{tpu_custom_call.1} parent=1 // pred_fallthru
      _
    %p90 = scmp.eq.s32.totalorder 0, 0
    // Predicated region
    $region42: #{tpu_custom_call.1} parent=1 // pred_check
      %p91 = pneg %p90
    $region43: #{tpu_custom_call.1} parent=1 // pred_check_branch
      %93 = sbr.rel (%p91) target = $region45
    $region44: #{tpu_custom_call.1} parent=1 // pred_region
      %94 = vst [vmem:[#allocation2] sm:$0xff] 0.0
      %95 = vst [vmem:[#allocation2 + $0x8] sm:$0xff] 0.0
      %96 = vst [vmem:[#allocation2 + $0x10] sm:$0xff] 0.0
      %97 = vst [vmem:[#allocation2 + $0x18] sm:$0xff] 0.0
      %98 = vst [vmem:[#allocation2 + $0x20] sm:$0xff] 0.0
      %99 = vst [vmem:[#allocation2 + $0x28] sm:$0xff] 0.0
      %100 = vst [vmem:[#allocation2 + $0x30] sm:$0xff] 0.0
      %101 = vst [vmem:[#allocation2 + $0x38] sm:$0xff] 0.0
      %102 = vst [vmem:[#allocation2 + $0x40] sm:$0xff] 0.0
      %103 = vst [vmem:[#allocation2 + $0x48] sm:$0xff] 0.0
      %104 = vst [vmem:[#allocation2 + $0x50] sm:$0xff] 0.0
      %105 = vst [vmem:[#allocation2 + $0x58] sm:$0xff] 0.0
      %106 = vst [vmem:[#allocation2 + $0x60] sm:$0xff] 0.0
      %107 = vst [vmem:[#allocation2 + $0x68] sm:$0xff] 0.0
      %108 = vst [vmem:[#allocation2 + $0x70] sm:$0xff] 0.0
      %109 = vst [vmem:[#allocation2 + $0x78] sm:$0xff] 0.0
    $region45: #{tpu_custom_call.1} parent=1 // pred_fallthru
      _
    %v110 = vld [vmem:[#allocation2] sm:$0xff]
    %v111 = vld [vmem:[#allocation2 + $0x8] sm:$0xff]
    %v112 = vld [vmem:[#allocation2 + $0x10] sm:$0xff]
    %v113 = vld [vmem:[#allocation2 + $0x18] sm:$0xff]
    %v114 = vld [vmem:[#allocation2 + $0x20] sm:$0xff]
    %v115 = vld [vmem:[#allocation2 + $0x28] sm:$0xff]
    %v116 = vld [vmem:[#allocation2 + $0x30] sm:$0xff]
    %v117 = vld [vmem:[#allocation2 + $0x38] sm:$0xff]
    %v118 = vld [vmem:[#allocation2 + $0x40] sm:$0xff]
    %v119 = vld [vmem:[#allocation2 + $0x48] sm:$0xff]
    %v120 = vld [vmem:[#allocation2 + $0x50] sm:$0xff]
    %v121 = vld [vmem:[#allocation2 + $0x58] sm:$0xff]
    %v122 = vld [vmem:[#allocation2 + $0x60] sm:$0xff]
    %v123 = vld [vmem:[#allocation2 + $0x68] sm:$0xff]
    %v124 = vld [vmem:[#allocation2 + $0x70] sm:$0xff]
    %v125 = vld [vmem:[#allocation2 + $0x78] sm:$0xff]
    %v126 = vld [vmem:[#allocation3] sm:$0xf]
    %v127 = vld [vmem:[#allocation3 + $0x4] sm:$0xf]
    %v128 = vld [vmem:[#allocation3 + $0x8] sm:$0xf]
    %v129 = vld [vmem:[#allocation3 + $0xc] sm:$0xf]
    %v130 = vld [vmem:[#allocation3 + $0x10] sm:$0xf]
    %v131 = vld [vmem:[#allocation3 + $0x14] sm:$0xf]
    %v132 = vld [vmem:[#allocation3 + $0x18] sm:$0xf]
    %v133 = vld [vmem:[#allocation3 + $0x1c] sm:$0xf]
    %v134 = vld [vmem:[#allocation3 + $0x20] sm:$0xf]
    %v135 = vld [vmem:[#allocation3 + $0x24] sm:$0xf]
    %v136 = vld [vmem:[#allocation3 + $0x28] sm:$0xf]
    %v137 = vld [vmem:[#allocation3 + $0x2c] sm:$0xf]
    %v138 = vld [vmem:[#allocation3 + $0x30] sm:$0xf]
    %v139 = vld [vmem:[#allocation3 + $0x34] sm:$0xf]
    %v140 = vld [vmem:[#allocation3 + $0x38] sm:$0xf]
    %v141 = vld [vmem:[#allocation3 + $0x3c] sm:$0xf]
    %v142 = vld [vmem:[#allocation6] sm:$0xf]
    %v143 = vld [vmem:[#allocation6 + $0x4] sm:$0xf]
    %v144 = vld [vmem:[#allocation6 + $0x8] sm:$0xf]
    %v145 = vld [vmem:[#allocation6 + $0xc] sm:$0xf]
    %v146 = vld [vmem:[#allocation6 + $0x10] sm:$0xf]
    %v147 = vld [vmem:[#allocation6 + $0x14] sm:$0xf]
    %v148 = vld [vmem:[#allocation6 + $0x18] sm:$0xf]
    %v149 = vld [vmem:[#allocation6 + $0x1c] sm:$0xf]
    %v150 = vld [vmem:[#allocation6 + $0x20] sm:$0xf]
    %v151 = vld [vmem:[#allocation6 + $0x24] sm:$0xf]
    %v152 = vld [vmem:[#allocation6 + $0x28] sm:$0xf]
    %v153 = vld [vmem:[#allocation6 + $0x2c] sm:$0xf]
    %v154 = vld [vmem:[#allocation6 + $0x30] sm:$0xf]
    %v155 = vld [vmem:[#allocation6 + $0x34] sm:$0xf]
    %v156 = vld [vmem:[#allocation6 + $0x38] sm:$0xf]
    %v157 = vld [vmem:[#allocation6 + $0x3c] sm:$0xf]
    %v174 = vunpack.c.l.b16 %v126
    %v175 = vunpack.c.l.b16 %v127
    %v176 = vunpack.c.l.b16 %v128
    %v177 = vunpack.c.l.b16 %v129
    %v178 = vunpack.c.l.b16 %v130
    %v179 = vunpack.c.l.b16 %v131
    %v180 = vunpack.c.l.b16 %v132
    %v181 = vunpack.c.l.b16 %v133
    %v182 = vunpack.c.l.b16 %v134
    %v183 = vunpack.c.l.b16 %v135
    %v184 = vunpack.c.l.b16 %v136
    %v185 = vunpack.c.l.b16 %v137
    %v186 = vunpack.c.l.b16 %v138
    %v187 = vunpack.c.l.b16 %v139
    %v188 = vunpack.c.l.b16 %v140
    %v189 = vunpack.c.l.b16 %v141
    %v190 = vpack.c.b16 %v175, %v174
    %v191 = vpack.c.b16 %v177, %v176
    %v192 = vpack.c.b16 %v179, %v178
    %v193 = vpack.c.b16 %v181, %v180
    %v194 = vpack.c.b16 %v183, %v182
    %v195 = vpack.c.b16 %v185, %v184
    %v196 = vpack.c.b16 %v187, %v186
    %v197 = vpack.c.b16 %v189, %v188
    %v222 = vunpack.c.l.b16 %v142
    %v223 = vunpack.c.l.b16 %v143
    %v224 = vunpack.c.l.b16 %v144
    %v225 = vunpack.c.l.b16 %v145
    %v226 = vunpack.c.l.b16 %v146
    %v227 = vunpack.c.l.b16 %v147
    %v228 = vunpack.c.l.b16 %v148
    %v229 = vunpack.c.l.b16 %v149
    %v230 = vunpack.c.l.b16 %v150
    %v231 = vunpack.c.l.b16 %v151
    %v232 = vunpack.c.l.b16 %v152
    %v233 = vunpack.c.l.b16 %v153
    %v234 = vunpack.c.l.b16 %v154
    %v235 = vunpack.c.l.b16 %v155
    %v236 = vunpack.c.l.b16 %v156
    %v237 = vunpack.c.l.b16 %v157
    %v238 = vpack.c.b16 %v223, %v222
    %v239 = vpack.c.b16 %v225, %v224
    %v240 = vpack.c.b16 %v227, %v226
    %v241 = vpack.c.b16 %v229, %v228
    %v242 = vpack.c.b16 %v231, %v230
    %v243 = vpack.c.b16 %v233, %v232
    %v244 = vpack.c.b16 %v235, %v234
    %v245 = vpack.c.b16 %v237, %v236
    %254 = vmatpush.bf16.msra.mxu0 %v245
    %255 = vmatpush.bf16.msra.mxu0 %v244
    %256 = vmatpush.bf16.msra.mxu0 %v243
    %257 = vmatpush.bf16.msra.mxu0 %v242
    %258 = vmatpush.bf16.msra.mxu0 %v241
    %259 = vmatpush.bf16.msra.mxu0 %v240
    %260 = vmatpush.bf16.msra.mxu0 %v239
    %261 = vmatpush.bf16.msra.mxu0 %v238
    %262 = vmatmul.bf16.gmra.mxu0 %v190
    %v263 = vpop.f32.mrf.mxu0
    %v264 = vadd.f32 0.0, %v263
    %v265 = vpop.f32.mrf.mxu0
    %v266 = vadd.f32 0.0, %v265
    %267 = vmatmul.bf16.gmra.mxu0 %v191
    %v268 = vpop.f32.mrf.mxu0
    %v269 = vadd.f32 0.0, %v268
    %v270 = vpop.f32.mrf.mxu0
    %v271 = vadd.f32 0.0, %v270
    %272 = vmatmul.bf16.gmra.mxu0 %v192
    %v273 = vpop.f32.mrf.mxu0
    %v274 = vadd.f32 0.0, %v273
    %v275 = vpop.f32.mrf.mxu0
    %v276 = vadd.f32 0.0, %v275
    %277 = vmatmul.bf16.gmra.mxu0 %v193
    %v278 = vpop.f32.mrf.mxu0
    %v279 = vadd.f32 0.0, %v278
    %v280 = vpop.f32.mrf.mxu0
    %v281 = vadd.f32 0.0, %v280
    %282 = vmatmul.bf16.gmra.mxu0 %v194
    %v283 = vpop.f32.mrf.mxu0
    %v284 = vadd.f32 0.0, %v283
    %v285 = vpop.f32.mrf.mxu0
    %v286 = vadd.f32 0.0, %v285
    %287 = vmatmul.bf16.gmra.mxu0 %v195
    %v288 = vpop.f32.mrf.mxu0
    %v289 = vadd.f32 0.0, %v288
    %v290 = vpop.f32.mrf.mxu0
    %v291 = vadd.f32 0.0, %v290
    %292 = vmatmul.bf16.gmra.mxu0 %v196
    %v293 = vpop.f32.mrf.mxu0
    %v294 = vadd.f32 0.0, %v293
    %v295 = vpop.f32.mrf.mxu0
    %v296 = vadd.f32 0.0, %v295
    %297 = vmatmul.bf16.gmra.mxu0 %v197
    %v298 = vpop.f32.mrf.mxu0
    %v299 = vadd.f32 0.0, %v298
    %v300 = vpop.f32.mrf.mxu0
    %v301 = vadd.f32 0.0, %v300
    %302 = vdwg.mxu0
    %v303 = vadd.f32 %v110, %v264
    %v304 = vadd.f32 %v111, %v266
    %v305 = vadd.f32 %v112, %v269
    %v306 = vadd.f32 %v113, %v271
    %v307 = vadd.f32 %v114, %v274
    %v308 = vadd.f32 %v115, %v276
    %v309 = vadd.f32 %v116, %v279
    %v310 = vadd.f32 %v117, %v281
    %v311 = vadd.f32 %v118, %v284
    %v312 = vadd.f32 %v119, %v286
    %v313 = vadd.f32 %v120, %v289
    %v314 = vadd.f32 %v121, %v291
    %v315 = vadd.f32 %v122, %v294
    %v316 = vadd.f32 %v123, %v296
    %v317 = vadd.f32 %v124, %v299
    %v318 = vadd.f32 %v125, %v301
    %319 = vst [vmem:[#allocation2] sm:$0xff] %v303
    %320 = vst [vmem:[#allocation2 + $0x8] sm:$0xff] %v304
    %321 = vst [vmem:[#allocation2 + $0x10] sm:$0xff] %v305
    %322 = vst [vmem:[#allocation2 + $0x18] sm:$0xff] %v306
    %323 = vst [vmem:[#allocation2 + $0x20] sm:$0xff] %v307
    %324 = vst [vmem:[#allocation2 + $0x28] sm:$0xff] %v308
    %325 = vst [vmem:[#allocation2 + $0x30] sm:$0xff] %v309
    %326 = vst [vmem:[#allocation2 + $0x38] sm:$0xff] %v310
    %327 = vst [vmem:[#allocation2 + $0x40] sm:$0xff] %v311
    %328 = vst [vmem:[#allocation2 + $0x48] sm:$0xff] %v312
    %329 = vst [vmem:[#allocation2 + $0x50] sm:$0xff] %v313
    %330 = vst [vmem:[#allocation2 + $0x58] sm:$0xff] %v314
    %331 = vst [vmem:[#allocation2 + $0x60] sm:$0xff] %v315
    %332 = vst [vmem:[#allocation2 + $0x68] sm:$0xff] %v316
    %333 = vst [vmem:[#allocation2 + $0x70] sm:$0xff] %v317
    %334 = vst [vmem:[#allocation2 + $0x78] sm:$0xff] %v318
    // Predicated region
    $region46: #{tpu_custom_call.1} parent=1 // pred_check
      %p335 = pneg %p90
    $region47: #{tpu_custom_call.1} parent=1 // pred_check_branch
      %337 = sbr.rel (%p335) target = $region49
    $region48: #{tpu_custom_call.1} parent=1 // pred_region
      %v338 = vld [vmem:[#allocation2] sm:$0xff]
      %v339 = vld [vmem:[#allocation2 + $0x8] sm:$0xff]
      %v340 = vld [vmem:[#allocation2 + $0x10] sm:$0xff]
      %v341 = vld [vmem:[#allocation2 + $0x18] sm:$0xff]
      %v342 = vld [vmem:[#allocation2 + $0x20] sm:$0xff]
      %v343 = vld [vmem:[#allocation2 + $0x28] sm:$0xff]
      %v344 = vld [vmem:[#allocation2 + $0x30] sm:$0xff]
      %v345 = vld [vmem:[#allocation2 + $0x38] sm:$0xff]
      %v346 = vld [vmem:[#allocation2 + $0x40] sm:$0xff]
      %v347 = vld [vmem:[#allocation2 + $0x48] sm:$0xff]
      %v348 = vld [vmem:[#allocation2 + $0x50] sm:$0xff]
      %v349 = vld [vmem:[#allocation2 + $0x58] sm:$0xff]
      %v350 = vld [vmem:[#allocation2 + $0x60] sm:$0xff]
      %v351 = vld [vmem:[#allocation2 + $0x68] sm:$0xff]
      %v352 = vld [vmem:[#allocation2 + $0x70] sm:$0xff]
      %v353 = vld [vmem:[#allocation2 + $0x78] sm:$0xff]
      %v354 = vpack.c.bf16 %v339, %v338
      %v355 = vpack.c.bf16 %v341, %v340
      %v356 = vpack.c.bf16 %v343, %v342
      %v357 = vpack.c.bf16 %v345, %v344
      %v358 = vpack.c.bf16 %v347, %v346
      %v359 = vpack.c.bf16 %v349, %v348
      %v360 = vpack.c.bf16 %v351, %v350
      %v361 = vpack.c.bf16 %v353, %v352
      %v362 = vld [vmem:[#allocation8] sm:$0xf]
      %v363 = vld [vmem:[#allocation8 + $0x4] sm:$0xf]
      %v364 = vld [vmem:[#allocation8 + $0x8] sm:$0xf]
      %v365 = vld [vmem:[#allocation8 + $0xc] sm:$0xf]
      %v366 = vld [vmem:[#allocation8 + $0x10] sm:$0xf]
      %v367 = vld [vmem:[#allocation8 + $0x14] sm:$0xf]
      %v368 = vld [vmem:[#allocation8 + $0x18] sm:$0xf]
      %v369 = vld [vmem:[#allocation8 + $0x1c] sm:$0xf]
      %v370 = vld [vmem:[#allocation8 + $0x20] sm:$0xf]
      %v371 = vld [vmem:[#allocation8 + $0x24] sm:$0xf]
      %v372 = vld [vmem:[#allocation8 + $0x28] sm:$0xf]
      %v373 = vld [vmem:[#allocation8 + $0x2c] sm:$0xf]
      %v374 = vld [vmem:[#allocation8 + $0x30] sm:$0xf]
      %v375 = vld [vmem:[#allocation8 + $0x34] sm:$0xf]
      %v376 = vld [vmem:[#allocation8 + $0x38] sm:$0xf]
      %v377 = vld [vmem:[#allocation8 + $0x3c] sm:$0xf]
      %v378 = vld [vmem:[%s3] sm:$0x1]
      %v380 = vperm.slane %v378, 0
      %v398 = vunpack.c.l.b16 %v362
      %v399 = vunpack.c.l.b16 %v363
      %v400 = vunpack.c.l.b16 %v364
      %v401 = vunpack.c.l.b16 %v365
      %v402 = vunpack.c.l.b16 %v366
      %v403 = vunpack.c.l.b16 %v367
      %v404 = vunpack.c.l.b16 %v368
      %v405 = vunpack.c.l.b16 %v369
      %v406 = vunpack.c.l.b16 %v370
      %v407 = vunpack.c.l.b16 %v371
      %v408 = vunpack.c.l.b16 %v372
      %v409 = vunpack.c.l.b16 %v373
      %v410 = vunpack.c.l.b16 %v374
      %v411 = vunpack.c.l.b16 %v375
      %v412 = vunpack.c.l.b16 %v376
      %v413 = vunpack.c.l.b16 %v377
      %v414 = vpack.c.b16 %v399, %v398
      %v415 = vpack.c.b16 %v401, %v400
      %v416 = vpack.c.b16 %v403, %v402
      %v417 = vpack.c.b16 %v405, %v404
      %v418 = vpack.c.b16 %v407, %v406
      %v419 = vpack.c.b16 %v409, %v408
      %v420 = vpack.c.b16 %v411, %v410
      %v421 = vpack.c.b16 %v413, %v412
      %430 = vmatpush.bf16.msra.mxu0 %v421
      %431 = vmatpush.bf16.msra.mxu0 %v420
      %432 = vmatpush.bf16.msra.mxu0 %v419
      %433 = vmatpush.bf16.msra.mxu0 %v418
      %434 = vmatpush.bf16.msra.mxu0 %v417
      %435 = vmatpush.bf16.msra.mxu0 %v416
      %436 = vmatpush.bf16.msra.mxu0 %v415
      %437 = vmatpush.bf16.msra.mxu0 %v414
      %438 = vmatmul.bf16.gmra.mxu0 %v354
      %v439 = vpop.f32.mrf.mxu0
      %v440 = vadd.f32 %v380, %v439
      %v441 = vpop.f32.mrf.mxu0
      %v442 = vadd.f32 %v380, %v441
      %443 = vmatmul.bf16.gmra.mxu0 %v355
      %v444 = vpop.f32.mrf.mxu0
      %v445 = vadd.f32 %v380, %v444
      %v446 = vpop.f32.mrf.mxu0
      %v447 = vadd.f32 %v380, %v446
      %448 = vmatmul.bf16.gmra.mxu0 %v356
      %v449 = vpop.f32.mrf.mxu0
      %v450 = vadd.f32 %v380, %v449
      %v451 = vpop.f32.mrf.mxu0
      %v452 = vadd.f32 %v380, %v451
      %453 = vmatmul.bf16.gmra.mxu0 %v357
      %v454 = vpop.f32.mrf.mxu0
      %v455 = vadd.f32 %v380, %v454
      %v456 = vpop.f32.mrf.mxu0
      %v457 = vadd.f32 %v380, %v456
      %458 = vmatmul.bf16.gmra.mxu0 %v358
      %v459 = vpop.f32.mrf.mxu0
      %v460 = vadd.f32 %v380, %v459
      %v461 = vpop.f32.mrf.mxu0
      %v462 = vadd.f32 %v380, %v461
      %463 = vmatmul.bf16.gmra.mxu0 %v359
      %v464 = vpop.f32.mrf.mxu0
      %v465 = vadd.f32 %v380, %v464
      %v466 = vpop.f32.mrf.mxu0
      %v467 = vadd.f32 %v380, %v466
      %468 = vmatmul.bf16.gmra.mxu0 %v360
      %v469 = vpop.f32.mrf.mxu0
      %v470 = vadd.f32 %v380, %v469
      %v471 = vpop.f32.mrf.mxu0
      %v472 = vadd.f32 %v380, %v471
      %473 = vmatmul.bf16.gmra.mxu0 %v361
      %v474 = vpop.f32.mrf.mxu0
      %v475 = vadd.f32 %v380, %v474
      %v476 = vpop.f32.mrf.mxu0
      %v477 = vadd.f32 %v380, %v476
      %478 = vdwg.mxu0
      %v479 = vmax.f32 %v440, 0.0
      %v480 = vmax.f32 %v442, 0.0
      %v481 = vmax.f32 %v445, 0.0
      %v482 = vmax.f32 %v447, 0.0
      %v483 = vmax.f32 %v450, 0.0
      %v484 = vmax.f32 %v452, 0.0
      %v485 = vmax.f32 %v455, 0.0
      %v486 = vmax.f32 %v457, 0.0
      %v487 = vmax.f32 %v460, 0.0
      %v488 = vmax.f32 %v462, 0.0
      %v489 = vmax.f32 %v465, 0.0
      %v490 = vmax.f32 %v467, 0.0
      %v491 = vmax.f32 %v470, 0.0
      %v492 = vmax.f32 %v472, 0.0
      %v493 = vmax.f32 %v475, 0.0
      %v494 = vmax.f32 %v477, 0.0
      %v495 = vpack.c.bf16 %v480, %v479
      %v496 = vpack.c.bf16 %v482, %v481
      %v497 = vpack.c.bf16 %v484, %v483
      %v498 = vpack.c.bf16 %v486, %v485
      %v499 = vpack.c.bf16 %v488, %v487
      %v500 = vpack.c.bf16 %v490, %v489
      %v501 = vpack.c.bf16 %v492, %v491
      %v502 = vpack.c.bf16 %v494, %v493
      %v503 = vld [vmem:[#allocation9] sm:$0xf]
      %v504 = vld [vmem:[#allocation9 + $0x4] sm:$0xf]
      %v505 = vld [vmem:[#allocation9 + $0x8] sm:$0xf]
      %v506 = vld [vmem:[#allocation9 + $0xc] sm:$0xf]
      %v507 = vld [vmem:[#allocation9 + $0x10] sm:$0xf]
      %v508 = vld [vmem:[#allocation9 + $0x14] sm:$0xf]
      %v509 = vld [vmem:[#allocation9 + $0x18] sm:$0xf]
      %v510 = vld [vmem:[#allocation9 + $0x1c] sm:$0xf]
      %v511 = vld [vmem:[#allocation9 + $0x20] sm:$0xf]
      %v512 = vld [vmem:[#allocation9 + $0x24] sm:$0xf]
      %v513 = vld [vmem:[#allocation9 + $0x28] sm:$0xf]
      %v514 = vld [vmem:[#allocation9 + $0x2c] sm:$0xf]
      %v515 = vld [vmem:[#allocation9 + $0x30] sm:$0xf]
      %v516 = vld [vmem:[#allocation9 + $0x34] sm:$0xf]
      %v517 = vld [vmem:[#allocation9 + $0x38] sm:$0xf]
      %v518 = vld [vmem:[#allocation9 + $0x3c] sm:$0xf]
      %v519 = vld [vmem:[%s5] sm:$0x1]
      %v521 = vperm.slane %v519, 0
      %v539 = vunpack.c.l.b16 %v503
      %v540 = vunpack.c.l.b16 %v504
      %v541 = vunpack.c.l.b16 %v505
      %v542 = vunpack.c.l.b16 %v506
      %v543 = vunpack.c.l.b16 %v507
      %v544 = vunpack.c.l.b16 %v508
      %v545 = vunpack.c.l.b16 %v509
      %v546 = vunpack.c.l.b16 %v510
      %v547 = vunpack.c.l.b16 %v511
      %v548 = vunpack.c.l.b16 %v512
      %v549 = vunpack.c.l.b16 %v513
      %v550 = vunpack.c.l.b16 %v514
      %v551 = vunpack.c.l.b16 %v515
      %v552 = vunpack.c.l.b16 %v516
      %v553 = vunpack.c.l.b16 %v517
      %v554 = vunpack.c.l.b16 %v518
      %v555 = vpack.c.b16 %v540, %v539
      %v556 = vpack.c.b16 %v542, %v541
      %v557 = vpack.c.b16 %v544, %v543
      %v558 = vpack.c.b16 %v546, %v545
      %v559 = vpack.c.b16 %v548, %v547
      %v560 = vpack.c.b16 %v550, %v549
      %v561 = vpack.c.b16 %v552, %v551
      %v562 = vpack.c.b16 %v554, %v553
      %571 = vmatpush.bf16.msra.mxu0 %v562
      %572 = vmatpush.bf16.msra.mxu0 %v561
      %573 = vmatpush.bf16.msra.mxu0 %v560
      %574 = vmatpush.bf16.msra.mxu0 %v559
      %575 = vmatpush.bf16.msra.mxu0 %v558
      %576 = vmatpush.bf16.msra.mxu0 %v557
      %577 = vmatpush.bf16.msra.mxu0 %v556
      %578 = vmatpush.bf16.msra.mxu0 %v555
      %579 = vmatmul.bf16.gmra.mxu0 %v495
      %v580 = vpop.f32.mrf.mxu0
      %v581 = vadd.f32 %v521, %v580
      %v582 = vpop.f32.mrf.mxu0
      %v583 = vadd.f32 %v521, %v582
      %584 = vmatmul.bf16.gmra.mxu0 %v496
      %v585 = vpop.f32.mrf.mxu0
      %v586 = vadd.f32 %v521, %v585
      %v587 = vpop.f32.mrf.mxu0
      %v588 = vadd.f32 %v521, %v587
      %589 = vmatmul.bf16.gmra.mxu0 %v497
      %v590 = vpop.f32.mrf.mxu0
      %v591 = vadd.f32 %v521, %v590
      %v592 = vpop.f32.mrf.mxu0
      %v593 = vadd.f32 %v521, %v592
      %594 = vmatmul.bf16.gmra.mxu0 %v498
      %v595 = vpop.f32.mrf.mxu0
      %v596 = vadd.f32 %v521, %v595
      %v597 = vpop.f32.mrf.mxu0
      %v598 = vadd.f32 %v521, %v597
      %599 = vmatmul.bf16.gmra.mxu0 %v499
      %v600 = vpop.f32.mrf.mxu0
      %v601 = vadd.f32 %v521, %v600
      %v602 = vpop.f32.mrf.mxu0
      %v603 = vadd.f32 %v521, %v602
      %604 = vmatmul.bf16.gmra.mxu0 %v500
      %v605 = vpop.f32.mrf.mxu0
      %v606 = vadd.f32 %v521, %v605
      %v607 = vpop.f32.mrf.mxu0
      %v608 = vadd.f32 %v521, %v607
      %609 = vmatmul.bf16.gmra.mxu0 %v501
      %v610 = vpop.f32.mrf.mxu0
      %v611 = vadd.f32 %v521, %v610
      %v612 = vpop.f32.mrf.mxu0
      %v613 = vadd.f32 %v521, %v612
      %614 = vmatmul.bf16.gmra.mxu0 %v502
      %v615 = vpop.f32.mrf.mxu0
      %v616 = vadd.f32 %v521, %v615
      %v617 = vpop.f32.mrf.mxu0
      %v618 = vadd.f32 %v521, %v617
      %619 = vdwg.mxu0
      %s620 = smul.u32 0, 128
      %v621 = vlaneseq
      %v622 = vshrl.u32 %v621, 7
      %v623 = vadd.s32 %v622, 8
      %v624 = vadd.s32 %v622, 16
      %v625 = vadd.s32 %v622, 24
      %v626 = vadd.s32 %v622, 32
      %v627 = vadd.s32 %v622, 40
      %v628 = vadd.s32 %v622, 48
      %v629 = vadd.s32 %v622, 56
      %v630 = vadd.s32 %v622, 64
      %v631 = vadd.s32 %v622, 72
      %v632 = vadd.s32 %v622, 80
      %v633 = vadd.s32 %v622, 88
      %v634 = vadd.s32 %v622, 96
      %v635 = vadd.s32 %v622, 104
      %v636 = vadd.s32 %v622, 112
      %v637 = vadd.s32 %v622, 120
      %v638 = vstv %s620
      %v639 = vadd.s32 %v638, %v622
      %v640 = vadd.s32 %v638, %v623
      %v641 = vadd.s32 %v638, %v624
      %v642 = vadd.s32 %v638, %v625
      %v643 = vadd.s32 %v638, %v626
      %v644 = vadd.s32 %v638, %v627
      %v645 = vadd.s32 %v638, %v628
      %v646 = vadd.s32 %v638, %v629
      %v647 = vadd.s32 %v638, %v630
      %v648 = vadd.s32 %v638, %v631
      %v649 = vadd.s32 %v638, %v632
      %v650 = vadd.s32 %v638, %v633
      %v651 = vadd.s32 %v638, %v634
      %v652 = vadd.s32 %v638, %v635
      %v653 = vadd.s32 %v638, %v636
      %v654 = vadd.s32 %v638, %v637
      %vm655 = vcmp.lt.s32.totalorder %v639, 16
      %vm656 = vcmp.lt.s32.totalorder %v640, 16
      %vm657 = vcmp.lt.s32.totalorder %v641, 16
      %vm658 = vcmp.lt.s32.totalorder %v642, 16
      %vm659 = vcmp.lt.s32.totalorder %v643, 16
      %vm660 = vcmp.lt.s32.totalorder %v644, 16
      %vm661 = vcmp.lt.s32.totalorder %v645, 16
      %vm662 = vcmp.lt.s32.totalorder %v646, 16
      %vm663 = vcmp.lt.s32.totalorder %v647, 16
      %vm664 = vcmp.lt.s32.totalorder %v648, 16
      %vm665 = vcmp.lt.s32.totalorder %v649, 16
      %vm666 = vcmp.lt.s32.totalorder %v650, 16
      %vm667 = vcmp.lt.s32.totalorder %v651, 16
      %vm668 = vcmp.lt.s32.totalorder %v652, 16
      %vm669 = vcmp.lt.s32.totalorder %v653, 16
      %vm670 = vcmp.lt.s32.totalorder %v654, 16
      %v671 = vsel %vm655, 1, 0
      %v672 = vsel %vm656, 1, 0
      %v673 = vsel %vm657, 1, 0
      %v674 = vsel %vm658, 1, 0
      %v675 = vsel %vm659, 1, 0
      %v676 = vsel %vm660, 1, 0
      %v677 = vsel %vm661, 1, 0
      %v678 = vsel %vm662, 1, 0
      %v679 = vsel %vm663, 1, 0
      %v680 = vsel %vm664, 1, 0
      %v681 = vsel %vm665, 1, 0
      %v682 = vsel %vm666, 1, 0
      %v683 = vsel %vm667, 1, 0
      %v684 = vsel %vm668, 1, 0
      %v685 = vsel %vm669, 1, 0
      %v686 = vsel %vm670, 1, 0
      %v687 = vcvt.s32.f32 %v671
      %v688 = vcvt.s32.f32 %v672
      %v689 = vcvt.s32.f32 %v673
      %v690 = vcvt.s32.f32 %v674
      %v691 = vcvt.s32.f32 %v675
      %v692 = vcvt.s32.f32 %v676
      %v693 = vcvt.s32.f32 %v677
      %v694 = vcvt.s32.f32 %v678
      %v695 = vcvt.s32.f32 %v679
      %v696 = vcvt.s32.f32 %v680
      %v697 = vcvt.s32.f32 %v681
      %v698 = vcvt.s32.f32 %v682
      %v699 = vcvt.s32.f32 %v683
      %v700 = vcvt.s32.f32 %v684
      %v701 = vcvt.s32.f32 %v685
      %v702 = vcvt.s32.f32 %v686
      %v703 = vmul.f32 %v581, %v687
      %v704 = vmul.f32 %v583, %v688
      %v705 = vmul.f32 %v586, %v689
      %v706 = vmul.f32 %v588, %v690
      %v707 = vmul.f32 %v591, %v691
      %v708 = vmul.f32 %v593, %v692
      %v709 = vmul.f32 %v596, %v693
      %v710 = vmul.f32 %v598, %v694
      %v711 = vmul.f32 %v601, %v695
      %v712 = vmul.f32 %v603, %v696
      %v713 = vmul.f32 %v606, %v697
      %v714 = vmul.f32 %v608, %v698
      %v715 = vmul.f32 %v611, %v699
      %v716 = vmul.f32 %v613, %v700
      %v717 = vmul.f32 %v616, %v701
      %v718 = vmul.f32 %v618, %v702
      %v719 = vadd.f32 %v703, %v704
      %v720 = vadd.f32 %v719, %v705
      %v721 = vadd.f32 %v720, %v706
      %v722 = vadd.f32 %v721, %v707
      %v723 = vadd.f32 %v722, %v708
      %v724 = vadd.f32 %v723, %v709
      %v725 = vadd.f32 %v724, %v710
      %v726 = vadd.f32 %v725, %v711
      %v727 = vadd.f32 %v726, %v712
      %v728 = vadd.f32 %v727, %v713
      %v729 = vadd.f32 %v728, %v714
      %v730 = vadd.f32 %v729, %v715
      %v731 = vadd.f32 %v730, %v716
      %v732 = vadd.f32 %v731, %v717
      %v733 = vadd.f32 %v732, %v718
      %v734 = vrot.slane %v733, 4
      %v735 = vadd.f32 %v733, %v734
      %v736 = vrot.slane %v735, 2
      %v737 = vadd.f32 %v735, %v736
      %v738 = vrot.slane %v737, 1
      %v739 = vadd.f32 %v737, %v738
      %v740 = vmul.f32 %v703, %v581
      %v741 = vmul.f32 %v704, %v583
      %v742 = vmul.f32 %v705, %v586
      %v743 = vmul.f32 %v706, %v588
      %v744 = vmul.f32 %v707, %v591
      %v745 = vmul.f32 %v708, %v593
      %v746 = vmul.f32 %v709, %v596
      %v747 = vmul.f32 %v710, %v598
      %v748 = vmul.f32 %v711, %v601
      %v749 = vmul.f32 %v712, %v603
      %v750 = vmul.f32 %v713, %v606
      %v751 = vmul.f32 %v714, %v608
      %v752 = vmul.f32 %v715, %v611
      %v753 = vmul.f32 %v716, %v613
      %v754 = vmul.f32 %v717, %v616
      %v755 = vmul.f32 %v718, %v618
      %v756 = vadd.f32 %v740, %v741
      %v757 = vadd.f32 %v756, %v742
      %v758 = vadd.f32 %v757, %v743
      %v759 = vadd.f32 %v758, %v744
      %v760 = vadd.f32 %v759, %v745
      %v761 = vadd.f32 %v760, %v746
      %v762 = vadd.f32 %v761, %v747
      %v763 = vadd.f32 %v762, %v748
      %v764 = vadd.f32 %v763, %v749
      %v765 = vadd.f32 %v764, %v750
      %v766 = vadd.f32 %v765, %v751
      %v767 = vadd.f32 %v766, %v752
      %v768 = vadd.f32 %v767, %v753
      %v769 = vadd.f32 %v768, %v754
      %v770 = vadd.f32 %v769, %v755
      %v771 = vrot.slane %v770, 4
      %v772 = vadd.f32 %v770, %v771
      %v773 = vrot.slane %v772, 2
      %v774 = vadd.f32 %v772, %v773
      %v775 = vrot.slane %v774, 1
      %v776 = vadd.f32 %v774, %v775
      %777 = vst [vmem:[#allocation12] sm:$0x1] %v739
      %778 = vst [vmem:[#allocation12 + $0x1] sm:$0x1] %v776
      %v779 = vpack.c.bf16 %v581, %v581
      %v780 = vpack.c.bf16 %v583, %v583
      %v781 = vpack.c.bf16 %v586, %v586
      %v782 = vpack.c.bf16 %v588, %v588
      %v783 = vpack.c.bf16 %v591, %v591
      %v784 = vpack.c.bf16 %v593, %v593
      %v785 = vpack.c.bf16 %v596, %v596
      %v786 = vpack.c.bf16 %v598, %v598
      %v787 = vpack.c.bf16 %v601, %v601
      %v788 = vpack.c.bf16 %v603, %v603
      %v789 = vpack.c.bf16 %v606, %v606
      %v790 = vpack.c.bf16 %v608, %v608
      %v791 = vpack.c.bf16 %v611, %v611
      %v792 = vpack.c.bf16 %v613, %v613
      %v793 = vpack.c.bf16 %v616, %v616
      %v794 = vpack.c.bf16 %v618, %v618
      %795 = vst [vmem:[#allocation11] sm:$0xf] %v779
      %796 = vst [vmem:[#allocation11 + $0x4] sm:$0xf] %v780
      %797 = vst [vmem:[#allocation11 + $0x8] sm:$0xf] %v781
      %798 = vst [vmem:[#allocation11 + $0xc] sm:$0xf] %v782
      %799 = vst [vmem:[#allocation11 + $0x10] sm:$0xf] %v783
      %800 = vst [vmem:[#allocation11 + $0x14] sm:$0xf] %v784
      %801 = vst [vmem:[#allocation11 + $0x18] sm:$0xf] %v785
      %802 = vst [vmem:[#allocation11 + $0x1c] sm:$0xf] %v786
      %803 = vst [vmem:[#allocation11 + $0x20] sm:$0xf] %v787
      %804 = vst [vmem:[#allocation11 + $0x24] sm:$0xf] %v788
      %805 = vst [vmem:[#allocation11 + $0x28] sm:$0xf] %v789
      %806 = vst [vmem:[#allocation11 + $0x2c] sm:$0xf] %v790
      %807 = vst [vmem:[#allocation11 + $0x30] sm:$0xf] %v791
      %808 = vst [vmem:[#allocation11 + $0x34] sm:$0xf] %v792
      %809 = vst [vmem:[#allocation11 + $0x38] sm:$0xf] %v793
      %810 = vst [vmem:[#allocation11 + $0x3c] sm:$0xf] %v794
    $region49: #{tpu_custom_call.1} parent=1 // pred_fallthru
      _
    // Predicated region
    $region50: #{tpu_custom_call.1} parent=1 // pred_check
      _
    $region51: #{tpu_custom_call.1} parent=1 // pred_check_branch
      %812 = sbr.rel (0) target = $region53
    $region52: #{tpu_custom_call.1} parent=1 // pred_region
      %814 = vsyncadd [#allocation5], 0
      %s815 = sshll.u32 [#allocation11], 4
      %s816 = int_to_ptr.vmem [resolvable:$true] %s815
      %s817 = sshll.u32 %s6, 4
      %s818 = int_to_ptr.hbm [resolvable:$true] %s817
      %823 = dma.vmem_to_hbm [thread:$0]  %s816, 1024, %s818, [#allocation5], 64, 64, 4
    $region53: #{tpu_custom_call.1} parent=1 // pred_fallthru
      _
    // Predicated region
    $region54: #{tpu_custom_call.1} parent=1 // pred_check
      _
    $region55: #{tpu_custom_call.1} parent=1 // pred_check_branch
      %825 = sbr.rel (0) target = $region57
    $region56: #{tpu_custom_call.1} parent=1 // pred_region
      %827 = vsyncadd [#allocation13], 0
      %s829 = sshll.u32 [#allocation12], 4
      %s830 = int_to_ptr.vmem [resolvable:$true] %s829
      %s831 = sshll.u32 %s7, 4
      %s832 = int_to_ptr.hbm [resolvable:$true] %s831
      %834 = dma.vmem_to_hbm [thread:$0]  %s830, 32, %s832, [#allocation13]
    $region57: #{tpu_custom_call.1} parent=1 // pred_fallthru
      _
    // Predicated region
    $region58: #{tpu_custom_call.1} parent=1 // pred_check
      _
    $region59: #{tpu_custom_call.1} parent=1 // pred_check_branch
      %836 = sbr.rel (0) target = $region61
    $region60: #{tpu_custom_call.1} parent=1 // pred_region
      %838 = dma.done [#allocation5], 1024
    $region61: #{tpu_custom_call.1} parent=1 // pred_fallthru
      _
    // Predicated region
    $region62: #{tpu_custom_call.1} parent=1 // pred_check
      _
    $region63: #{tpu_custom_call.1} parent=1 // pred_check_branch
      %840 = sbr.rel (0) target = $region65
    $region64: #{tpu_custom_call.1} parent=1 // pred_region
      %842 = dma.done [#allocation13], 32
    $region65: #{tpu_custom_call.1} parent=1 // pred_fallthru
      _
    %843 = vsyncpa [#allocation4], 1
    %844 = vsyncpa [#allocation7], 1
    %845 = vsyncpa [#allocation10], 1
    %846 = vsyncpa [#allocation5], 1
    %847 = vsyncpa [#allocation13], 1

</llo_original>
